<compile_context>
chip_gen: v5e
topology: v5e:2x2
jax: 0.10.0
libtpu: 0.0.40
codegen_flags: <defaults>
</compile_context>

<pallas_src>
import functools

import jax
import jax.numpy as jnp
import numpy as np
from jax.experimental import pallas as pl
from jax.experimental.pallas import tpu as pltpu

MIN_DEPTH = 1e-3
MAX_DEPTH = 10.0
HIDDEN = 32

_LANE = 128
_SUBLANE = 8
_PACK = _LANE * _SUBLANE  # 1024: smallest lane*sublane-aligned pixel unit


def _round_up(x, m):
    return (x + m - 1) // m * m


def _pick_chunk(tm8, cap=512):
    """Largest multiple-of-128 divisor of tm8 that is <= cap (keeps h <=16 vregs)."""
    c = min(cap, tm8)
    while tm8 % c:
        c -= _LANE
    return c


def _coarse_tile_kernel(x_ref, gt_ref, w1_ref, b1_ref, w2_ref, b2_ref,
                        depth_ref, stats_ref, z_ref, *,
                        min_depth, max_depth, tm8, chunk):
    """Fused depth-head + per-tile SILog partial sums.

    x_ref:     (C, TM)       f32  pixel tile, channels on sublanes, pixels on lanes
    gt_ref:    (8, TM/8)     f32  ground-truth depth, sublane-packed
    w1_ref:    (HIDDEN, C)   f32
    b1_ref:    (HIDDEN, 1)   f32
    w2_ref:    (HIDDEN, 1)   f32
    b2_ref:    (1, 1)        f32
    depth_ref: (8, TM/8)     f32  predicted metric depth (dense unmasked store)
    stats_ref: (1, 128)      f32  lanes 0..2 = [sum_g, sum_g^2, valid_count]
    z_ref:     (8, TM/8)     f32  VMEM scratch for pre-activations (packed layout)
    """
    H = w1_ref.shape[0]
    n_col = tm8 // chunk

    w1 = w1_ref[...]
    # Hoist broadcasts out of the unrolled loop (JAX does not CSE broadcast_in_dim).
    b1_b = jnp.broadcast_to(b1_ref[...], (H, chunk))
    w2_b = jnp.broadcast_to(w2_ref[...], (H, chunk))
    b2_b = jnp.broadcast_to(b2_ref[...], (1, chunk))

    # --- Phase 1: chunked tiny-MLP depth head (stand-in for ZoeDepth coarse) ---
    # h=(H, chunk) stays in vregs; pre-activations land directly in the packed
    # (8, tm8) layout so the elementwise tail runs at full sublane occupancy.
    for r in range(_SUBLANE):            # static -> static store indices
        for cb in range(n_col):
            col = cb * chunk
            start = r * tm8 + col        # flat pixel offset inside the tile
            x_c = x_ref[:, start:start + chunk]                        # (C, chunk)
            h = jnp.dot(w1, x_c, preferred_element_type=jnp.float32)   # (H, chunk) MXU
            h = jnp.maximum(h + b1_b, 0.0)
            # HIDDEN -> 1 as VPU multiply + sublane reduce (avoid N=1 MXU matmul).
            z = jnp.sum(h * w2_b, axis=0, keepdims=True) + b2_b        # (1, chunk)
            z_ref[r:r + 1, col:col + chunk] = z

    # --- Phase 2: sigmoid squash + masked SILog partial sums, 8-sublane dense ---
    z8 = z_ref[...]                                                    # (8, tm8)
    gt = gt_ref[...]
    depth = min_depth + (max_depth - min_depth) * jax.nn.sigmoid(z8)
    depth_ref[...] = depth                                             # dense store

    valid = (gt > min_depth) & (gt < max_depth)
    g = jnp.where(valid, jnp.log(depth) - jnp.log(jnp.maximum(gt, 1e-8)), 0.0)
    sum_g = jnp.sum(g)
    sum_gg = jnp.sum(g * g)
    cnt = jnp.sum(valid.astype(jnp.float32))

    lane = jax.lax.broadcasted_iota(jnp.int32, (1, _LANE), 1)
    stats_ref[...] = jnp.where(
        lane == 0, sum_g,
        jnp.where(lane == 1, sum_gg,
                  jnp.where(lane == 2, cnt, 0.0)))


def coarse_branch_and_sigloss(x, gt, w1, b1, w2, b2, *,
                              min_depth, max_depth, tile_pixels=32768):
    """x: (N, C, HW) f32, gt: (N, 1, HW) f32.  Returns (depth (N, HW), stats)."""
    N, C, HW = x.shape
    H = w1.shape[0]

    # Tile size: multiple of 8*128, capped by tile_pixels; pad HW up to a
    # multiple of the tile (padded gt=0 is invalid -> excluded from the loss).
    tm = min(_round_up(tile_pixels, _PACK), _round_up(HW, _PACK))
    hw_pad = _round_up(HW, tm)
    T = hw_pad // tm
    tm8 = tm // _SUBLANE
    chunk = _pick_chunk(tm8)

    pad = hw_pad - HW
    if pad:
        x = jnp.pad(x, ((0, 0), (0, 0), (0, pad)))
        gt = jnp.pad(gt, ((0, 0), (0, 0), (0, pad)))
    gt_packed = gt.reshape(N, T, _SUBLANE, tm8)      # pure reshape, no transpose

    kernel = functools.partial(_coarse_tile_kernel,
                               min_depth=min_depth, max_depth=max_depth,
                               tm8=tm8, chunk=chunk)

    m_total = N * hw_pad
    cost = pl.CostEstimate(
        flops=2 * m_total * (C * H + H),
        transcendentals=4 * m_total,                       # sigmoid + 2 logs
        bytes_accessed=4 * m_total * (C + 2) + N * T * _LANE * 4,
    )

    depth, stats = pl.pallas_call(
        kernel,
        out_shape=(
            jax.ShapeDtypeStruct((N, T, _SUBLANE, tm8), jnp.float32),
            jax.ShapeDtypeStruct((N, T, 1, _LANE), jnp.float32),
        ),
        grid_spec=pltpu.PrefetchScalarGridSpec(
            num_scalar_prefetch=0,
            grid=(N, T),
            in_specs=[
                pl.BlockSpec((None, C, tm), lambda n, t: (n, 0, t)),              # x
                pl.BlockSpec((None, None, _SUBLANE, tm8), lambda n, t: (n, t, 0, 0)),  # gt
                pl.BlockSpec((H, C), lambda n, t: (0, 0)),                        # w1 (resident)
                pl.BlockSpec((H, 1), lambda n, t: (0, 0)),                        # b1
                pl.BlockSpec((H, 1), lambda n, t: (0, 0)),                        # w2
                pl.BlockSpec((1, 1), lambda n, t: (0, 0)),                        # b2
            ],
            out_specs=(
                pl.BlockSpec((None, None, _SUBLANE, tm8), lambda n, t: (n, t, 0, 0)),  # depth
                pl.BlockSpec((None, None, 1, _LANE), lambda n, t: (n, t, 0, 0)),       # stats
            ),
            scratch_shapes=[pltpu.VMEM((_SUBLANE, tm8), jnp.float32)],            # z (packed)
        ),
        # Both axes independent ("parallel"): correctness never relies on a
        # cross-iteration accumulator; v7x can shard either axis across its 2 TCs.
        compiler_params=pltpu.CompilerParams(
            dimension_semantics=("parallel", "parallel"),
        ),
        cost_estimate=cost,
    )(x, gt_packed, w1, b1, w2, b2)

    depth_flat = depth.reshape(N, hw_pad)[:, :HW]
    return depth_flat, stats


def baseline_pretrain_forward(image_lr, depth_gt, params,
                              min_depth=MIN_DEPTH, max_depth=MAX_DEPTH,
                              tile_pixels=32768):
    """Replicates BaselinePretrain.forward(mode='train', target='coarse')."""
    N, C, Himg, Wimg = image_lr.shape
    HW = Himg * Wimg
    # NCHW is already channel-major per sample: pure reshape, no transpose.
    x = image_lr.reshape(N, C, HW)
    gt = depth_gt.reshape(N, 1, HW)

    depth_flat, stats = coarse_branch_and_sigloss(
        x, gt, params["w1"], params["b1"], params["w2"], params["b2"],
        min_depth=min_depth, max_depth=max_depth, tile_pixels=tile_pixels)

    depth_pred = depth_flat.reshape(N, 1, Himg, Wimg)    # metric_depth, NCHW

    # SILog finalization from the per-tile partial sums (tiny JAX reduce).
    # TODO(synk): E[g^2]-E[g]^2 matches the reference formulation but is a
    #             cancellation-prone estimator; Welford would be more robust.
    sum_g = jnp.sum(stats[:, :, 0, 0])
    sum_gg = jnp.sum(stats[:, :, 0, 1])
    cnt = jnp.sum(stats[:, :, 0, 2])
    n = jnp.maximum(cnt, 1.0)
    mean_g = sum_g / n
    var_g = sum_gg / n - mean_g * mean_g
    dg = var_g + 0.15 * mean_g * mean_g
    coarse_loss = 10.0 * jnp.sqrt(jnp.maximum(dg, 0.0))

    loss_dict = {"coarse_loss": coarse_loss, "total_loss": coarse_loss}
    aux = {"rgb": image_lr, "depth_pred": depth_pred, "depth_gt": depth_gt}
    return loss_dict, aux


def _reference(image_lr, depth_gt, params, min_depth=MIN_DEPTH, max_depth=MAX_DEPTH):
    """Pure-JAX reference for correctness sanity check."""
    N, C, Himg, Wimg = image_lr.shape
    x = image_lr.reshape(N, C, Himg * Wimg)
    gt = depth_gt.reshape(N, 1, Himg * Wimg)
    h = jnp.einsum("hc,ncm->nhm", params["w1"], x) + params["b1"][None]
    h = jnp.maximum(h, 0.0)
    z = jnp.sum(h * params["w2"][None], axis=1, keepdims=True) + params["b2"][None]
    depth = min_depth + (max_depth - min_depth) * jax.nn.sigmoid(z)
    valid = (gt > min_depth) & (gt < max_depth)
    g = jnp.where(valid, jnp.log(depth) - jnp.log(jnp.maximum(gt, 1e-8)), 0.0)
    n = jnp.maximum(jnp.sum(valid.astype(jnp.float32)), 1.0)
    mean_g = jnp.sum(g) / n
    var_g = jnp.sum(g * g) / n - mean_g ** 2
    loss = 10.0 * jnp.sqrt(jnp.maximum(var_g + 0.15 * mean_g ** 2, 0.0))
    return depth.reshape(N, 1, Himg, Wimg), loss


if __name__ == "__main__":
    # Small shapes consistent with the module's train path:
    #   image_lr: (N, 3, H, W), depth_gt: (N, 1, H, W)
    # HW = 40*64 = 2560 is deliberately NOT a multiple of 1024 so the padded /
    # multi-tile path is exercised.
    N, C, Himg, Wimg = 2, 3, 40, 64

    key = jax.random.PRNGKey(0)
    k_img, k_gt, k_w1, k_w2 = jax.random.split(key, 4)

    image_lr = jax.random.normal(k_img, (N, C, Himg, Wimg), dtype=jnp.float32)
    # gt depth roughly in [0, 1.1*max_depth] so the validity mask is exercised
    depth_gt = jax.random.uniform(
        k_gt, (N, 1, Himg, Wimg), dtype=jnp.float32, minval=0.0,
        maxval=1.1 * MAX_DEPTH)

    params = {
        "w1": 0.1 * jax.random.normal(k_w1, (HIDDEN, C), dtype=jnp.float32),
        "b1": jnp.zeros((HIDDEN, 1), dtype=jnp.float32),
        "w2": 0.1 * jax.random.normal(k_w2, (HIDDEN, 1), dtype=jnp.float32),
        "b2": jnp.zeros((1, 1), dtype=jnp.float32),
    }

    ref_depth, ref_loss = _reference(image_lr, depth_gt, params)

    # 1) Small tile (1024 pixels) -> grid (2, 3) with 512 padded pixels:
    #    exercises multi-tile + padding + per-tile partial stats.
    loss_dict, aux = jax.block_until_ready(
        baseline_pretrain_forward(image_lr, depth_gt, params, tile_pixels=1024))
    np.testing.assert_allclose(np.asarray(aux["depth_pred"]),
                               np.asarray(ref_depth), rtol=1e-3, atol=1e-4)
    np.testing.assert_allclose(float(loss_dict["coarse_loss"]),
                               float(ref_loss), rtol=1e-3, atol=1e-4)

    # 2) Default (large-tile) config -> single padded tile per sample.
    loss_dict2, aux2 = jax.block_until_ready(
        baseline_pretrain_forward(image_lr, depth_gt, params))
    np.testing.assert_allclose(np.asarray(aux2["depth_pred"]),
                               np.asarray(ref_depth), rtol=1e-3, atol=1e-4)
    np.testing.assert_allclose(float(loss_dict2["coarse_loss"]),
                               float(ref_loss), rtol=1e-3, atol=1e-4)

    assert aux["depth_pred"].shape == (N, 1, Himg, Wimg)
    print("KERNEL_OK")
</pallas_src>

<mosaic_0001>
module attributes {stable_mosaic.version = 11 : i64} {
  func.func @_coarse_tile_kernel(%arg0: i32, %arg1: i32, %arg2: memref<1x3x1024xf32, #tpu.memory_space<vmem>>, %arg3: memref<1x1x8x128xf32, #tpu.memory_space<vmem>>, %arg4: memref<32x3xf32, #tpu.memory_space<vmem>>, %arg5: memref<32x1xf32, #tpu.memory_space<vmem>>, %arg6: memref<32x1xf32, #tpu.memory_space<vmem>>, %arg7: memref<1x1xf32, #tpu.memory_space<vmem>>, %arg8: memref<1x1x8x128xf32, #tpu.memory_space<vmem>>, %arg9: memref<1x1x1x128xf32, #tpu.memory_space<vmem>>, %arg10: memref<8x128xf32, #tpu.memory_space<vmem>>) attributes {dimension_semantics = [#tpu.dimension_semantics<parallel>, #tpu.dimension_semantics<parallel>], iteration_bounds = array<i64: 2, 3>, scalar_prefetch = 0 : i64, scratch_operands = 1 : i64, tpu.core_type = #tpu.core_type<tc>, window_params = [{transform_indices = @transform_0, window_bounds = array<i64: 1, 3, 1024>}, {transform_indices = @transform_1, window_bounds = array<i64: 1, 1, 8, 128>}, {pipeline_mode = #tpu.pipeline_mode<synchronous>, transform_indices = @transform_2, window_bounds = array<i64: 32, 3>}, {pipeline_mode = #tpu.pipeline_mode<synchronous>, transform_indices = @transform_3, window_bounds = array<i64: 32, 1>}, {pipeline_mode = #tpu.pipeline_mode<synchronous>, transform_indices = @transform_4, window_bounds = array<i64: 32, 1>}, {pipeline_mode = #tpu.pipeline_mode<synchronous>, transform_indices = @transform_5, window_bounds = array<i64: 1, 1>}, {transform_indices = @transform_6, window_bounds = array<i64: 1, 1, 8, 128>}, {transform_indices = @transform_7, window_bounds = array<i64: 1, 1, 1, 128>}]} {
    %c0 = arith.constant 0 : index
    %c0_0 = arith.constant 0 : index
    %0 = vector.load %arg4[%c0, %c0_0] : memref<32x3xf32, #tpu.memory_space<vmem>>, vector<32x3xf32>
    %c0_1 = arith.constant 0 : index
    %c0_2 = arith.constant 0 : index
    %1 = vector.load %arg5[%c0_1, %c0_2] : memref<32x1xf32, #tpu.memory_space<vmem>>, vector<32x1xf32>
    %2 = vector.shape_cast %1 : vector<32x1xf32> to vector<32x1xf32>
    %3 = vector.broadcast %2 : vector<32x1xf32> to vector<32x128xf32>
    %c0_3 = arith.constant 0 : index
    %c0_4 = arith.constant 0 : index
    %4 = vector.load %arg6[%c0_3, %c0_4] : memref<32x1xf32, #tpu.memory_space<vmem>>, vector<32x1xf32>
    %5 = vector.shape_cast %4 : vector<32x1xf32> to vector<32x1xf32>
    %6 = vector.broadcast %5 : vector<32x1xf32> to vector<32x128xf32>
    %c0_5 = arith.constant 0 : index
    %c0_6 = arith.constant 0 : index
    %7 = vector.load %arg7[%c0_5, %c0_6] : memref<1x1xf32, #tpu.memory_space<vmem>>, vector<1x1xf32>
    %8 = vector.shape_cast %7 : vector<1x1xf32> to vector<1x1xf32>
    %9 = vector.broadcast %8 : vector<1x1xf32> to vector<1x128xf32>
    %c0_7 = arith.constant 0 : index
    %c0_8 = arith.constant 0 : index
    %c0_9 = arith.constant 0 : index
    %10 = vector.load %arg2[%c0_7, %c0_8, %c0_9] : memref<1x3x1024xf32, #tpu.memory_space<vmem>>, vector<1x3x128xf32>
    %11 = vector.shape_cast %10 : vector<1x3x128xf32> to vector<3x128xf32>
    %cst = arith.constant dense<0.000000e+00> : vector<32x128xf32>
    %12 = tpu.matmul %0, %11, %cst {dimension_numbers = #tpu.dot_dimension_numbers<[1], [0], [0], [1], [0, 0, 1, 1], [], []>} : vector<32x3xf32>, vector<3x128xf32>, vector<32x128xf32> -> vector<32x128xf32>
    %13 = arith.addf %12, %3 : vector<32x128xf32>
    %cst_10 = arith.constant 0.000000e+00 : f32
    %14 = vector.broadcast %cst_10 : f32 to vector<32x128xf32>
    %15 = arith.maximumf %13, %14 : vector<32x128xf32>
    %16 = arith.mulf %15, %6 : vector<32x128xf32>
    %cst_11 = arith.constant dense<0.000000e+00> : vector<128xf32>
    %17 = vector.multi_reduction <add>, %16, %cst_11 [0] : vector<32x128xf32> to vector<128xf32>
    %18 = vector.shape_cast %17 : vector<128xf32> to vector<1x128xf32>
    %19 = arith.addf %18, %9 : vector<1x128xf32>
    %c0_12 = arith.constant 0 : index
    %c0_13 = arith.constant 0 : index
    %20 = vector.load %arg10[%c0_12, %c0_13] : memref<8x128xf32, #tpu.memory_space<vmem>>, vector<1x128xf32>
    tpu.vector_store %arg10[%c0_12, %c0_13], %19 {strides = array<i32>} : memref<8x128xf32, #tpu.memory_space<vmem>>, vector<1x128xf32>,
    %c0_14 = arith.constant 0 : index
    %c0_15 = arith.constant 0 : index
    %c128 = arith.constant 128 : index
    %21 = vector.load %arg2[%c0_14, %c0_15, %c128] : memref<1x3x1024xf32, #tpu.memory_space<vmem>>, vector<1x3x128xf32>
    %22 = vector.shape_cast %21 : vector<1x3x128xf32> to vector<3x128xf32>
    %cst_16 = arith.constant dense<0.000000e+00> : vector<32x128xf32>
    %23 = tpu.matmul %0, %22, %cst_16 {dimension_numbers = #tpu.dot_dimension_numbers<[1], [0], [0], [1], [0, 0, 1, 1], [], []>} : vector<32x3xf32>, vector<3x128xf32>, vector<32x128xf32> -> vector<32x128xf32>
    %24 = arith.addf %23, %3 : vector<32x128xf32>
    %cst_17 = arith.constant 0.000000e+00 : f32
    %25 = vector.broadcast %cst_17 : f32 to vector<32x128xf32>
    %26 = arith.maximumf %24, %25 : vector<32x128xf32>
    %27 = arith.mulf %26, %6 : vector<32x128xf32>
    %cst_18 = arith.constant dense<0.000000e+00> : vector<128xf32>
    %28 = vector.multi_reduction <add>, %27, %cst_18 [0] : vector<32x128xf32> to vector<128xf32>
    %29 = vector.shape_cast %28 : vector<128xf32> to vector<1x128xf32>
    %30 = arith.addf %29, %9 : vector<1x128xf32>
    %c1 = arith.constant 1 : index
    %c0_19 = arith.constant 0 : index
    %31 = vector.load %arg10[%c1, %c0_19] : memref<8x128xf32, #tpu.memory_space<vmem>>, vector<1x128xf32>
    tpu.vector_store %arg10[%c1, %c0_19], %30 {strides = array<i32>} : memref<8x128xf32, #tpu.memory_space<vmem>>, vector<1x128xf32>,
    %c0_20 = arith.constant 0 : index
    %c0_21 = arith.constant 0 : index
    %c256 = arith.constant 256 : index
    %32 = vector.load %arg2[%c0_20, %c0_21, %c256] : memref<1x3x1024xf32, #tpu.memory_space<vmem>>, vector<1x3x128xf32>
    %33 = vector.shape_cast %32 : vector<1x3x128xf32> to vector<3x128xf32>
    %cst_22 = arith.constant dense<0.000000e+00> : vector<32x128xf32>
    %34 = tpu.matmul %0, %33, %cst_22 {dimension_numbers = #tpu.dot_dimension_numbers<[1], [0], [0], [1], [0, 0, 1, 1], [], []>} : vector<32x3xf32>, vector<3x128xf32>, vector<32x128xf32> -> vector<32x128xf32>
    %35 = arith.addf %34, %3 : vector<32x128xf32>
    %cst_23 = arith.constant 0.000000e+00 : f32
    %36 = vector.broadcast %cst_23 : f32 to vector<32x128xf32>
    %37 = arith.maximumf %35, %36 : vector<32x128xf32>
    %38 = arith.mulf %37, %6 : vector<32x128xf32>
    %cst_24 = arith.constant dense<0.000000e+00> : vector<128xf32>
    %39 = vector.multi_reduction <add>, %38, %cst_24 [0] : vector<32x128xf32> to vector<128xf32>
    %40 = vector.shape_cast %39 : vector<128xf32> to vector<1x128xf32>
    %41 = arith.addf %40, %9 : vector<1x128xf32>
    %c2 = arith.constant 2 : index
    %c0_25 = arith.constant 0 : index
    %42 = vector.load %arg10[%c2, %c0_25] : memref<8x128xf32, #tpu.memory_space<vmem>>, vector<1x128xf32>
    tpu.vector_store %arg10[%c2, %c0_25], %41 {strides = array<i32>} : memref<8x128xf32, #tpu.memory_space<vmem>>, vector<1x128xf32>,
    %c0_26 = arith.constant 0 : index
    %c0_27 = arith.constant 0 : index
    %c384 = arith.constant 384 : index
    %43 = vector.load %arg2[%c0_26, %c0_27, %c384] : memref<1x3x1024xf32, #tpu.memory_space<vmem>>, vector<1x3x128xf32>
    %44 = vector.shape_cast %43 : vector<1x3x128xf32> to vector<3x128xf32>
    %cst_28 = arith.constant dense<0.000000e+00> : vector<32x128xf32>
    %45 = tpu.matmul %0, %44, %cst_28 {dimension_numbers = #tpu.dot_dimension_numbers<[1], [0], [0], [1], [0, 0, 1, 1], [], []>} : vector<32x3xf32>, vector<3x128xf32>, vector<32x128xf32> -> vector<32x128xf32>
    %46 = arith.addf %45, %3 : vector<32x128xf32>
    %cst_29 = arith.constant 0.000000e+00 : f32
    %47 = vector.broadcast %cst_29 : f32 to vector<32x128xf32>
    %48 = arith.maximumf %46, %47 : vector<32x128xf32>
    %49 = arith.mulf %48, %6 : vector<32x128xf32>
    %cst_30 = arith.constant dense<0.000000e+00> : vector<128xf32>
    %50 = vector.multi_reduction <add>, %49, %cst_30 [0] : vector<32x128xf32> to vector<128xf32>
    %51 = vector.shape_cast %50 : vector<128xf32> to vector<1x128xf32>
    %52 = arith.addf %51, %9 : vector<1x128xf32>
    %c3 = arith.constant 3 : index
    %c0_31 = arith.constant 0 : index
    %53 = vector.load %arg10[%c3, %c0_31] : memref<8x128xf32, #tpu.memory_space<vmem>>, vector<1x128xf32>
    tpu.vector_store %arg10[%c3, %c0_31], %52 {strides = array<i32>} : memref<8x128xf32, #tpu.memory_space<vmem>>, vector<1x128xf32>,
    %c0_32 = arith.constant 0 : index
    %c0_33 = arith.constant 0 : index
    %c512 = arith.constant 512 : index
    %54 = vector.load %arg2[%c0_32, %c0_33, %c512] : memref<1x3x1024xf32, #tpu.memory_space<vmem>>, vector<1x3x128xf32>
    %55 = vector.shape_cast %54 : vector<1x3x128xf32> to vector<3x128xf32>
    %cst_34 = arith.constant dense<0.000000e+00> : vector<32x128xf32>
    %56 = tpu.matmul %0, %55, %cst_34 {dimension_numbers = #tpu.dot_dimension_numbers<[1], [0], [0], [1], [0, 0, 1, 1], [], []>} : vector<32x3xf32>, vector<3x128xf32>, vector<32x128xf32> -> vector<32x128xf32>
    %57 = arith.addf %56, %3 : vector<32x128xf32>
    %cst_35 = arith.constant 0.000000e+00 : f32
    %58 = vector.broadcast %cst_35 : f32 to vector<32x128xf32>
    %59 = arith.maximumf %57, %58 : vector<32x128xf32>
    %60 = arith.mulf %59, %6 : vector<32x128xf32>
    %cst_36 = arith.constant dense<0.000000e+00> : vector<128xf32>
    %61 = vector.multi_reduction <add>, %60, %cst_36 [0] : vector<32x128xf32> to vector<128xf32>
    %62 = vector.shape_cast %61 : vector<128xf32> to vector<1x128xf32>
    %63 = arith.addf %62, %9 : vector<1x128xf32>
    %c4 = arith.constant 4 : index
    %c0_37 = arith.constant 0 : index
    %64 = vector.load %arg10[%c4, %c0_37] : memref<8x128xf32, #tpu.memory_space<vmem>>, vector<1x128xf32>
    tpu.vector_store %arg10[%c4, %c0_37], %63 {strides = array<i32>} : memref<8x128xf32, #tpu.memory_space<vmem>>, vector<1x128xf32>,
    %c0_38 = arith.constant 0 : index
    %c0_39 = arith.constant 0 : index
    %c640 = arith.constant 640 : index
    %65 = vector.load %arg2[%c0_38, %c0_39, %c640] : memref<1x3x1024xf32, #tpu.memory_space<vmem>>, vector<1x3x128xf32>
    %66 = vector.shape_cast %65 : vector<1x3x128xf32> to vector<3x128xf32>
    %cst_40 = arith.constant dense<0.000000e+00> : vector<32x128xf32>
    %67 = tpu.matmul %0, %66, %cst_40 {dimension_numbers = #tpu.dot_dimension_numbers<[1], [0], [0], [1], [0, 0, 1, 1], [], []>} : vector<32x3xf32>, vector<3x128xf32>, vector<32x128xf32> -> vector<32x128xf32>
    %68 = arith.addf %67, %3 : vector<32x128xf32>
    %cst_41 = arith.constant 0.000000e+00 : f32
    %69 = vector.broadcast %cst_41 : f32 to vector<32x128xf32>
    %70 = arith.maximumf %68, %69 : vector<32x128xf32>
    %71 = arith.mulf %70, %6 : vector<32x128xf32>
    %cst_42 = arith.constant dense<0.000000e+00> : vector<128xf32>
    %72 = vector.multi_reduction <add>, %71, %cst_42 [0] : vector<32x128xf32> to vector<128xf32>
    %73 = vector.shape_cast %72 : vector<128xf32> to vector<1x128xf32>
    %74 = arith.addf %73, %9 : vector<1x128xf32>
    %c5 = arith.constant 5 : index
    %c0_43 = arith.constant 0 : index
    %75 = vector.load %arg10[%c5, %c0_43] : memref<8x128xf32, #tpu.memory_space<vmem>>, vector<1x128xf32>
    tpu.vector_store %arg10[%c5, %c0_43], %74 {strides = array<i32>} : memref<8x128xf32, #tpu.memory_space<vmem>>, vector<1x128xf32>,
    %c0_44 = arith.constant 0 : index
    %c0_45 = arith.constant 0 : index
    %c768 = arith.constant 768 : index
    %76 = vector.load %arg2[%c0_44, %c0_45, %c768] : memref<1x3x1024xf32, #tpu.memory_space<vmem>>, vector<1x3x128xf32>
    %77 = vector.shape_cast %76 : vector<1x3x128xf32> to vector<3x128xf32>
    %cst_46 = arith.constant dense<0.000000e+00> : vector<32x128xf32>
    %78 = tpu.matmul %0, %77, %cst_46 {dimension_numbers = #tpu.dot_dimension_numbers<[1], [0], [0], [1], [0, 0, 1, 1], [], []>} : vector<32x3xf32>, vector<3x128xf32>, vector<32x128xf32> -> vector<32x128xf32>
    %79 = arith.addf %78, %3 : vector<32x128xf32>
    %cst_47 = arith.constant 0.000000e+00 : f32
    %80 = vector.broadcast %cst_47 : f32 to vector<32x128xf32>
    %81 = arith.maximumf %79, %80 : vector<32x128xf32>
    %82 = arith.mulf %81, %6 : vector<32x128xf32>
    %cst_48 = arith.constant dense<0.000000e+00> : vector<128xf32>
    %83 = vector.multi_reduction <add>, %82, %cst_48 [0] : vector<32x128xf32> to vector<128xf32>
    %84 = vector.shape_cast %83 : vector<128xf32> to vector<1x128xf32>
    %85 = arith.addf %84, %9 : vector<1x128xf32>
    %c6 = arith.constant 6 : index
    %c0_49 = arith.constant 0 : index
    %86 = vector.load %arg10[%c6, %c0_49] : memref<8x128xf32, #tpu.memory_space<vmem>>, vector<1x128xf32>
    tpu.vector_store %arg10[%c6, %c0_49], %85 {strides = array<i32>} : memref<8x128xf32, #tpu.memory_space<vmem>>, vector<1x128xf32>,
    %c0_50 = arith.constant 0 : index
    %c0_51 = arith.constant 0 : index
    %c896 = arith.constant 896 : index
    %87 = vector.load %arg2[%c0_50, %c0_51, %c896] : memref<1x3x1024xf32, #tpu.memory_space<vmem>>, vector<1x3x128xf32>
    %88 = vector.shape_cast %87 : vector<1x3x128xf32> to vector<3x128xf32>
    %cst_52 = arith.constant dense<0.000000e+00> : vector<32x128xf32>
    %89 = tpu.matmul %0, %88, %cst_52 {dimension_numbers = #tpu.dot_dimension_numbers<[1], [0], [0], [1], [0, 0, 1, 1], [], []>} : vector<32x3xf32>, vector<3x128xf32>, vector<32x128xf32> -> vector<32x128xf32>
    %90 = arith.addf %89, %3 : vector<32x128xf32>
    %cst_53 = arith.constant 0.000000e+00 : f32
    %91 = vector.broadcast %cst_53 : f32 to vector<32x128xf32>
    %92 = arith.maximumf %90, %91 : vector<32x128xf32>
    %93 = arith.mulf %92, %6 : vector<32x128xf32>
    %cst_54 = arith.constant dense<0.000000e+00> : vector<128xf32>
    %94 = vector.multi_reduction <add>, %93, %cst_54 [0] : vector<32x128xf32> to vector<128xf32>
    %95 = vector.shape_cast %94 : vector<128xf32> to vector<1x128xf32>
    %96 = arith.addf %95, %9 : vector<1x128xf32>
    %c7 = arith.constant 7 : index
    %c0_55 = arith.constant 0 : index
    %97 = vector.load %arg10[%c7, %c0_55] : memref<8x128xf32, #tpu.memory_space<vmem>>, vector<1x128xf32>
    tpu.vector_store %arg10[%c7, %c0_55], %96 {strides = array<i32>} : memref<8x128xf32, #tpu.memory_space<vmem>>, vector<1x128xf32>,
    %c0_56 = arith.constant 0 : index
    %c0_57 = arith.constant 0 : index
    %98 = vector.load %arg10[%c0_56, %c0_57] : memref<8x128xf32, #tpu.memory_space<vmem>>, vector<8x128xf32>
    %c0_58 = arith.constant 0 : index
    %c0_59 = arith.constant 0 : index
    %c0_60 = arith.constant 0 : index
    %c0_61 = arith.constant 0 : index
    %99 = vector.load %arg3[%c0_58, %c0_59, %c0_60, %c0_61] : memref<1x1x8x128xf32, #tpu.memory_space<vmem>>, vector<1x1x8x128xf32>
    %100 = vector.shape_cast %99 : vector<1x1x8x128xf32> to vector<8x128xf32>
    %101 = arith.negf %98 : vector<8x128xf32>
    %102 = math.exp %101 : vector<8x128xf32>
    %cst_62 = arith.constant 1.000000e+00 : f32
    %103 = vector.broadcast %cst_62 : f32 to vector<8x128xf32>
    %104 = arith.addf %103, %102 : vector<8x128xf32>
    %105 = arith.divf %103, %104 : vector<8x128xf32>
    %cst_63 = arith.constant 9.99899959 : f32
    %106 = vector.broadcast %cst_63 : f32 to vector<8x128xf32>
    %107 = arith.mulf %106, %105 : vector<8x128xf32>
    %cst_64 = arith.constant 1.000000e-03 : f32
    %108 = vector.broadcast %cst_64 : f32 to vector<8x128xf32>
    %109 = arith.addf %108, %107 : vector<8x128xf32>
    %c0_65 = arith.constant 0 : index
    %c0_66 = arith.constant 0 : index
    %c0_67 = arith.constant 0 : index
    %c0_68 = arith.constant 0 : index
    %110 = vector.load %arg8[%c0_65, %c0_66, %c0_67, %c0_68] : memref<1x1x8x128xf32, #tpu.memory_space<vmem>>, vector<1x1x8x128xf32>
    %111 = vector.shape_cast %110 : vector<1x1x8x128xf32> to vector<8x128xf32>
    %112 = vector.shape_cast %109 : vector<8x128xf32> to vector<1x1x8x128xf32>
    tpu.vector_store %arg8[%c0_65, %c0_66, %c0_67, %c0_68], %112 {strides = array<i32>} : memref<1x1x8x128xf32, #tpu.memory_space<vmem>>, vector<1x1x8x128xf32>,
    %cst_69 = arith.constant 1.000000e-03 : f32
    %113 = vector.broadcast %cst_69 : f32 to vector<8x128xf32>
    %114 = arith.cmpf ogt, %100, %113 : vector<8x128xf32>
    %cst_70 = arith.constant 1.000000e+01 : f32
    %115 = vector.broadcast %cst_70 : f32 to vector<8x128xf32>
    %116 = arith.cmpf olt, %100, %115 : vector<8x128xf32>
    %117 = arith.andi %114, %116 : vector<8x128xi1>
    %118 = math.log %109 : vector<8x128xf32>
    %cst_71 = arith.constant 9.99999993E-9 : f32
    %119 = vector.broadcast %cst_71 : f32 to vector<8x128xf32>
    %120 = arith.maximumf %100, %119 : vector<8x128xf32>
    %121 = math.log %120 : vector<8x128xf32>
    %122 = arith.subf %118, %121 : vector<8x128xf32>
    %cst_72 = arith.constant 0.000000e+00 : f32
    %123 = vector.broadcast %cst_72 : f32 to vector<8x128xf32>
    %124 = arith.select %117, %122, %123 : vector<8x128xi1>, vector<8x128xf32>
    %125 = vector.shape_cast %124 : vector<8x128xf32> to vector<1x8x128xf32>
    %cst_73 = arith.constant dense<0.000000e+00> : vector<1xf32>
    %126 = vector.multi_reduction <add>, %125, %cst_73 [1, 2] : vector<1x8x128xf32> to vector<1xf32>
    %127 = vector.shape_cast %126 : vector<1xf32> to vector<1x1x1xf32>
    %128 = vector.extract %127[0, 0, 0] : f32 from vector<1x1x1xf32>
    %129 = arith.mulf %124, %124 : vector<8x128xf32>
    %130 = vector.shape_cast %129 : vector<8x128xf32> to vector<1x8x128xf32>
    %cst_74 = arith.constant dense<0.000000e+00> : vector<1xf32>
    %131 = vector.multi_reduction <add>, %130, %cst_74 [1, 2] : vector<1x8x128xf32> to vector<1xf32>
    %132 = vector.shape_cast %131 : vector<1xf32> to vector<1x1x1xf32>
    %133 = vector.extract %132[0, 0, 0] : f32 from vector<1x1x1xf32>
    %134 = arith.extui %117 : vector<8x128xi1> to vector<8x128xi32>
    %135 = arith.sitofp %134 : vector<8x128xi32> to vector<8x128xf32>
    %136 = vector.shape_cast %135 : vector<8x128xf32> to vector<1x8x128xf32>
    %cst_75 = arith.constant dense<0.000000e+00> : vector<1xf32>
    %137 = vector.multi_reduction <add>, %136, %cst_75 [1, 2] : vector<1x8x128xf32> to vector<1xf32>
    %138 = vector.shape_cast %137 : vector<1xf32> to vector<1x1x1xf32>
    %139 = vector.extract %138[0, 0, 0] : f32 from vector<1x1x1xf32>
    %140 = tpu.iota {dimensions = array<i32: 1>} : vector<1x128xi32>
    %c0_i32 = arith.constant 0 : i32
    %141 = vector.broadcast %c0_i32 : i32 to vector<1x128xi32>
    %142 = arith.cmpi eq, %140, %141 : vector<1x128xi32>
    %c1_i32 = arith.constant 1 : i32
    %143 = vector.broadcast %c1_i32 : i32 to vector<1x128xi32>
    %144 = arith.cmpi eq, %140, %143 : vector<1x128xi32>
    %c2_i32 = arith.constant 2 : i32
    %145 = vector.broadcast %c2_i32 : i32 to vector<1x128xi32>
    %146 = arith.cmpi eq, %140, %145 : vector<1x128xi32>
    %cst_76 = arith.constant 0.000000e+00 : f32
    %147 = vector.broadcast %139 : f32 to vector<1x128xf32>
    %148 = vector.broadcast %cst_76 : f32 to vector<1x128xf32>
    %149 = arith.select %146, %147, %148 : vector<1x128xi1>, vector<1x128xf32>
    %150 = vector.broadcast %133 : f32 to vector<1x128xf32>
    %151 = arith.select %144, %150, %149 : vector<1x128xi1>, vector<1x128xf32>
    %152 = vector.broadcast %128 : f32 to vector<1x128xf32>
    %153 = arith.select %142, %152, %151 : vector<1x128xi1>, vector<1x128xf32>
    %c0_77 = arith.constant 0 : index
    %c0_78 = arith.constant 0 : index
    %c0_79 = arith.constant 0 : index
    %c0_80 = arith.constant 0 : index
    %154 = vector.load %arg9[%c0_77, %c0_78, %c0_79, %c0_80] : memref<1x1x1x128xf32, #tpu.memory_space<vmem>>, vector<1x1x1x128xf32>
    %155 = vector.shape_cast %154 : vector<1x1x1x128xf32> to vector<1x128xf32>
    %156 = vector.shape_cast %153 : vector<1x128xf32> to vector<1x1x1x128xf32>
    tpu.vector_store %arg9[%c0_77, %c0_78, %c0_79, %c0_80], %156 {strides = array<i32>} : memref<1x1x1x128xf32, #tpu.memory_space<vmem>>, vector<1x1x1x128xf32>,
    return
  }
  func.func @transform_0(%arg0: i32, %arg1: i32) -> (i32, i32, i32) {
    %c0_i32 = arith.constant 0 : i32
    %c0_i32_0 = arith.constant 0 : i32
    return %arg0, %c0_i32, %arg1 : i32, i32, i32
  }
  func.func @transform_1(%arg0: i32, %arg1: i32) -> (i32, i32, i32, i32) {
    %c0_i32 = arith.constant 0 : i32
    %c0_i32_0 = arith.constant 0 : i32
    %c0_i32_1 = arith.constant 0 : i32
    return %arg0, %arg1, %c0_i32, %c0_i32_0 : i32, i32, i32, i32
  }
  func.func @transform_2(%arg0: i32, %arg1: i32) -> (i32, i32) {
    %c0_i32 = arith.constant 0 : i32
    %c0_i32_0 = arith.constant 0 : i32
    %c0_i32_1 = arith.constant 0 : i32
    return %c0_i32, %c0_i32_0 : i32, i32
  }
  func.func @transform_3(%arg0: i32, %arg1: i32) -> (i32, i32) {
    %c0_i32 = arith.constant 0 : i32
    %c0_i32_0 = arith.constant 0 : i32
    %c0_i32_1 = arith.constant 0 : i32
    return %c0_i32, %c0_i32_0 : i32, i32
  }
  func.func @transform_4(%arg0: i32, %arg1: i32) -> (i32, i32) {
    %c0_i32 = arith.constant 0 : i32
    %c0_i32_0 = arith.constant 0 : i32
    %c0_i32_1 = arith.constant 0 : i32
    return %c0_i32, %c0_i32_0 : i32, i32
  }
  func.func @transform_5(%arg0: i32, %arg1: i32) -> (i32, i32) {
    %c0_i32 = arith.constant 0 : i32
    %c0_i32_0 = arith.constant 0 : i32
    %c0_i32_1 = arith.constant 0 : i32
    return %c0_i32, %c0_i32_0 : i32, i32
  }
  func.func @transform_6(%arg0: i32, %arg1: i32) -> (i32, i32, i32, i32) {
    %c0_i32 = arith.constant 0 : i32
    %c0_i32_0 = arith.constant 0 : i32
    %c0_i32_1 = arith.constant 0 : i32
    return %arg0, %arg1, %c0_i32, %c0_i32_0 : i32, i32, i32, i32
  }
  func.func @transform_7(%arg0: i32, %arg1: i32) -> (i32, i32, i32, i32) {
    %c0_i32 = arith.constant 0 : i32
    %c0_i32_0 = arith.constant 0 : i32
    %c0_i32_1 = arith.constant 0 : i32
    return %arg0, %arg1, %c0_i32, %c0_i32_0 : i32, i32, i32, i32
  }
}

</mosaic_0001>

<llo_original>
// kernel: tpu_custom_call.1
$region0: #{tpu_custom_call.1}
  #allocation0 [shape = 'u32[]', space=smem, size = 0x4, offset = 0x4, fixed_abs, tag = 'smem constant byte address 0x4 - core index']
  #allocation1 [shape = 'u32[72,128]{1,0:T(1,128)}', space=vmem, size = 0x9000, scoped, tag = 'internal scratch']
  #allocation2 [shape = 'f32[8,128]{1,0:T(8,128)}', space=vmem, size = 0x1000, scoped, tag = 'scratch operand']
  #allocation3 [shape = 'f32[1,1]{1,0:T(1,128)S(1)}', space=vmem, size = 0x200, scoped, tag = 'scoped memory for tpu_custom_call.1']
  %s0 = inlined_call_operand.vmem [shape: f32[2,3,3072], index: 0, kind: input, shape index: {}]
  %s1 = inlined_call_operand.vmem [shape: f32[2,3,8,128], index: 1, kind: input, shape index: {}]
  %s2 = inlined_call_operand.vmem [shape: f32[32,3], index: 2, kind: input, shape index: {}]
  %s3 = inlined_call_operand.vmem [shape: f32[32,1], index: 3, kind: input, shape index: {}]
  %s4 = inlined_call_operand.vmem [shape: f32[32,1], index: 4, kind: input, shape index: {}]
  %s5 = inlined_call_operand.<no memory space> [shape: f32[1,1], index: 5, kind: input, shape index: {}]
  %s6 = inlined_call_operand.hbm [shape: f32[2,3,8,128], index: 6, kind: output, shape index: {0}]
  %s7 = inlined_call_operand.hbm [shape: f32[2,3,1,128], index: 7, kind: output, shape index: {1}]
  %8 = xla_tuple %s6, %s7
  %s9 = sld [smem:[#allocation0]]
  $region65: #{tpu_custom_call.1} parent=0
    _
  %s11 = ssub.s32 1, %s9
  %s12 = scalar_select 0, %s11, %s9
  %v13 = vstv %s5
  %14 = vst [vmem:[#allocation3] sm:$0x1] %v13
  $region1: #{tpu_custom_call.1} parent=0
    #allocation4 [shape = 'u8[8192]{0}', space=vmem, size = 0x2000, scoped, tag = 'output window, operand 0']
    #allocation5 [shape = 's32[2]{0}', space=sflag, size = 0x8, scoped, tag = 'scoped memory for tpu_custom_call.1']
    #allocation6 [shape = 'u8[1024]{0}', space=vmem, size = 0x400, scoped, tag = 'output window, operand 1']
    #allocation7 [shape = 's32[2]{0}', space=sflag, size = 0x8, scoped, tag = 'scoped memory for tpu_custom_call.1']
    %15 = vsyncpa [#allocation5], 0
    %s16 = scalar_lea.sflag [#allocation5], 1
    %17 = vsyncpa %s16, 0
    %18 = vsyncpa [#allocation7], 0
    %s19 = scalar_lea.sflag [#allocation7], 1
    %20 = vsyncpa %s19, 0
    loop: start=0, step=1, limit=8
    $region2: #{tpu_custom_call.1} parent=1 // loop_pre_header
      _
    $region3: #{tpu_custom_call.1} parent=1 // loop_header
      %s22 = sphi 0, %s26
      %p23 = scmp.ge.s32.totalorder %s22, 8
      %s29 = sphi 0, %s41
      %s30 = sphi 0, %s37
      %s31 = sphi 0, %s29
      %s32 = sphi 0, %s30
      %s33 = sphi 0, %s31
      %s34 = sphi 0, %s32
      %s46 = sphi 0, %s48
      %s49 = sphi 0, %s46
      %s50 = sphi 0, %s49
      %s66 = sphi 0, %s50
      %s74 = sphi 0, %s76
      %s77 = sphi 0, %s74
      %s78 = sphi 0, %s77
      %s94 = sphi 0, %s78
      %s98 = sphi 0, %s98
      %s100 = sphi 0, %s98
      %s101 = sphi 0, %s100
      %s115 = sphi 0, %s101
      %s119 = sphi 0, %s119
      %s121 = sphi 0, %s119
      %s122 = sphi 0, %s121
      %s136 = sphi 0, %s122
      %s140 = sphi 0, %s140
      %s142 = sphi 0, %s140
      %s143 = sphi 0, %s142
      %s157 = sphi 0, %s143
      %s161 = sphi 0, %s161
      %s163 = sphi 0, %s161
      %s164 = sphi 0, %s163
      %s178 = sphi 0, %s164
      %s186 = sphi 0, %s188
      %s189 = sphi 0, %s186
      %s190 = sphi 0, %s189
      %s206 = sphi 0, %s190
      %s214 = sphi 0, %s216
      %s217 = sphi 0, %s214
      %s218 = sphi 0, %s217
      %s234 = sphi 0, %s218
    $region4: #{tpu_custom_call.1} parent=1 // loop_header_branch
      %25 = sbr.rel (%p23) target = $region8
    $region5: #{tpu_custom_call.1} parent=1 // loop_body
      %s27 = ssub.s32 %s22, 1
      %s28 = ssub.s32 %s22, 2
      %s35 = sadd.s32 1, %s30
      %p36 = scmp.ge.s32.totalorder %s35, 3
      %s37 = scalar_select %p36, 0, %s35
      %s38 = sadd.s32 1, %s29
      %s39 = scalar_select %p36, %s38, %s29
      %p40 = scmp.ge.s32.totalorder %s39, 2
      %s41 = scalar_select %p40, 0, %s39
      %s42 = ssub.s32 %s29, %s41
      %s43 = ssub.s32 %s30, %s37
      %s44 = sor.u32 %s42, %s43
      %p45 = scmp.eq.s32.totalorder %s44, 0
      %s47 = sadd.s32 %s46, 1
      %s48 = scalar_select %p45, %s46, %s47
      %p51 = pneg %p45
      %p52 = scmp.eq.s32.totalorder %s22, 5
      %p53 = por %p51, %p52
      %p54 = scmp.ne.s32.totalorder %s46, %s49
      %p55 = scmp.eq.s32.totalorder %s22, 0
      %p56 = por %p54, %p55
      %p57 = scmp.ne.s32.totalorder %s46, %s49
      %p58 = scmp.eq.s32.totalorder %s27, 5
      %p59 = por %p57, %p58
      %p60 = scmp.ne.s32.totalorder %s49, %s50
      %p61 = scmp.eq.s32.totalorder %s27, 0
      %p62 = por %p60, %p61
      %p63 = scmp.ne.s32.totalorder %s49, %s50
      %p64 = scmp.eq.s32.totalorder %s28, 5
      %p65 = por %p63, %p64
      %p67 = scmp.ne.s32.totalorder %s50, %s66
      %p68 = scmp.eq.s32.totalorder %s28, 0
      %p69 = por %p67, %p68
      %s70 = ssub.s32 %s29, %s41
      %s71 = ssub.s32 %s30, %s37
      %s72 = sor.u32 %s70, %s71
      %p73 = scmp.eq.s32.totalorder %s72, 0
      %s75 = sadd.s32 %s74, 1
      %s76 = scalar_select %p73, %s74, %s75
      %p79 = pneg %p73
      %p80 = scmp.eq.s32.totalorder %s22, 5
      %p81 = por %p79, %p80
      %p82 = scmp.ne.s32.totalorder %s74, %s77
      %p83 = scmp.eq.s32.totalorder %s22, 0
      %p84 = por %p82, %p83
      %p85 = scmp.ne.s32.totalorder %s74, %s77
      %p86 = scmp.eq.s32.totalorder %s27, 5
      %p87 = por %p85, %p86
      %p88 = scmp.ne.s32.totalorder %s77, %s78
      %p89 = scmp.eq.s32.totalorder %s27, 0
      %p90 = por %p88, %p89
      %p91 = scmp.ne.s32.totalorder %s77, %s78
      %p92 = scmp.eq.s32.totalorder %s28, 5
      %p93 = por %p91, %p92
      %p95 = scmp.ne.s32.totalorder %s78, %s94
      %p96 = scmp.eq.s32.totalorder %s28, 0
      %p97 = por %p95, %p96
      %s99 = sadd.s32 %s98, 1
      %p102 = scmp.eq.s32.totalorder %s22, 5
      %p103 = scmp.ne.s32.totalorder %s98, %s100
      %p104 = scmp.eq.s32.totalorder %s22, 0
      %p105 = por %p103, %p104
      %p106 = scmp.ne.s32.totalorder %s98, %s100
      %p107 = scmp.eq.s32.totalorder %s27, 5
      %p108 = por %p106, %p107
      %p109 = scmp.ne.s32.totalorder %s100, %s101
      %p110 = scmp.eq.s32.totalorder %s27, 0
      %p111 = por %p109, %p110
      %p112 = scmp.ne.s32.totalorder %s100, %s101
      %p113 = scmp.eq.s32.totalorder %s28, 5
      %p114 = por %p112, %p113
      %p116 = scmp.ne.s32.totalorder %s101, %s115
      %p117 = scmp.eq.s32.totalorder %s28, 0
      %p118 = por %p116, %p117
      %s120 = sadd.s32 %s119, 1
      %p123 = scmp.eq.s32.totalorder %s22, 5
      %p124 = scmp.ne.s32.totalorder %s119, %s121
      %p125 = scmp.eq.s32.totalorder %s22, 0
      %p126 = por %p124, %p125
      %p127 = scmp.ne.s32.totalorder %s119, %s121
      %p128 = scmp.eq.s32.totalorder %s27, 5
      %p129 = por %p127, %p128
      %p130 = scmp.ne.s32.totalorder %s121, %s122
      %p131 = scmp.eq.s32.totalorder %s27, 0
      %p132 = por %p130, %p131
      %p133 = scmp.ne.s32.totalorder %s121, %s122
      %p134 = scmp.eq.s32.totalorder %s28, 5
      %p135 = por %p133, %p134
      %p137 = scmp.ne.s32.totalorder %s122, %s136
      %p138 = scmp.eq.s32.totalorder %s28, 0
      %p139 = por %p137, %p138
      %s141 = sadd.s32 %s140, 1
      %p144 = scmp.eq.s32.totalorder %s22, 5
      %p145 = scmp.ne.s32.totalorder %s140, %s142
      %p146 = scmp.eq.s32.totalorder %s22, 0
      %p147 = por %p145, %p146
      %p148 = scmp.ne.s32.totalorder %s140, %s142
      %p149 = scmp.eq.s32.totalorder %s27, 5
      %p150 = por %p148, %p149
      %p151 = scmp.ne.s32.totalorder %s142, %s143
      %p152 = scmp.eq.s32.totalorder %s27, 0
      %p153 = por %p151, %p152
      %p154 = scmp.ne.s32.totalorder %s142, %s143
      %p155 = scmp.eq.s32.totalorder %s28, 5
      %p156 = por %p154, %p155
      %p158 = scmp.ne.s32.totalorder %s143, %s157
      %p159 = scmp.eq.s32.totalorder %s28, 0
      %p160 = por %p158, %p159
      %s162 = sadd.s32 %s161, 1
      %p165 = scmp.eq.s32.totalorder %s22, 5
      %p166 = scmp.ne.s32.totalorder %s161, %s163
      %p167 = scmp.eq.s32.totalorder %s22, 0
      %p168 = por %p166, %p167
      %p169 = scmp.ne.s32.totalorder %s161, %s163
      %p170 = scmp.eq.s32.totalorder %s27, 5
      %p171 = por %p169, %p170
      %p172 = scmp.ne.s32.totalorder %s163, %s164
      %p173 = scmp.eq.s32.totalorder %s27, 0
      %p174 = por %p172, %p173
      %p175 = scmp.ne.s32.totalorder %s163, %s164
      %p176 = scmp.eq.s32.totalorder %s28, 5
      %p177 = por %p175, %p176
      %p179 = scmp.ne.s32.totalorder %s164, %s178
      %p180 = scmp.eq.s32.totalorder %s28, 0
      %p181 = por %p179, %p180
      %s182 = ssub.s32 %s29, %s41
      %s183 = ssub.s32 %s30, %s37
      %s184 = sor.u32 %s182, %s183
      %p185 = scmp.eq.s32.totalorder %s184, 0
      %s187 = sadd.s32 %s186, 1
      %s188 = scalar_select %p185, %s186, %s187
      %p191 = pneg %p185
      %p192 = scmp.eq.s32.totalorder %s22, 5
      %p193 = por %p191, %p192
      %p194 = scmp.ne.s32.totalorder %s186, %s189
      %p195 = scmp.eq.s32.totalorder %s22, 0
      %p196 = por %p194, %p195
      %p197 = scmp.ne.s32.totalorder %s186, %s189
      %p198 = scmp.eq.s32.totalorder %s27, 5
      %p199 = por %p197, %p198
      %p200 = scmp.ne.s32.totalorder %s189, %s190
      %p201 = scmp.eq.s32.totalorder %s27, 0
      %p202 = por %p200, %p201
      %p203 = scmp.ne.s32.totalorder %s189, %s190
      %p204 = scmp.eq.s32.totalorder %s28, 5
      %p205 = por %p203, %p204
      %p207 = scmp.ne.s32.totalorder %s190, %s206
      %p208 = scmp.eq.s32.totalorder %s28, 0
      %p209 = por %p207, %p208
      %s210 = ssub.s32 %s29, %s41
      %s211 = ssub.s32 %s30, %s37
      %s212 = sor.u32 %s210, %s211
      %p213 = scmp.eq.s32.totalorder %s212, 0
      %s215 = sadd.s32 %s214, 1
      %s216 = scalar_select %p213, %s214, %s215
      %p219 = pneg %p213
      %p220 = scmp.eq.s32.totalorder %s22, 5
      %p221 = por %p219, %p220
      %p222 = scmp.ne.s32.totalorder %s214, %s217
      %p223 = scmp.eq.s32.totalorder %s22, 0
      %p224 = por %p222, %p223
      %p225 = scmp.ne.s32.totalorder %s214, %s217
      %p226 = scmp.eq.s32.totalorder %s27, 5
      %p227 = por %p225, %p226
      %p228 = scmp.ne.s32.totalorder %s217, %s218
      %p229 = scmp.eq.s32.totalorder %s27, 0
      %p230 = por %p228, %p229
      %p231 = scmp.ne.s32.totalorder %s217, %s218
      %p232 = scmp.eq.s32.totalorder %s28, 5
      %p233 = por %p231, %p232
      %p235 = scmp.ne.s32.totalorder %s218, %s234
      %p236 = scmp.eq.s32.totalorder %s28, 0
      %p237 = por %p235, %p236
      %p238 = scmp.le.s32.totalorder 1, %s22
      %p239 = scmp.lt.s32.totalorder %s22, 7
      %p240 = pnand %p238, %p239
      %p241 = pneg %p240
      // Predicated region
      $region9: #{tpu_custom_call.1} parent=5 // pred_check
        _
      $region10: #{tpu_custom_call.1} parent=5 // pred_check_branch
        %243 = sbr.rel (%p240) target = $region12
      $region11: #{tpu_custom_call.1} parent=5 // pred_region
        %s244 = ssub.s32 %s22, 1
        // Predicated region
        $region13: #{tpu_custom_call.1} parent=11 // pred_check
          %p245 = pneg %p111
        $region14: #{tpu_custom_call.1} parent=11 // pred_check_branch
          %247 = sbr.rel (%p245) target = $region16
        $region15: #{tpu_custom_call.1} parent=11 // pred_region
          _
        $region16: #{tpu_custom_call.1} parent=11 // pred_fallthru
          _
        // Predicated region
        $region17: #{tpu_custom_call.1} parent=11 // pred_check
          %p248 = pneg %p132
        $region18: #{tpu_custom_call.1} parent=11 // pred_check_branch
          %250 = sbr.rel (%p248) target = $region20
        $region19: #{tpu_custom_call.1} parent=11 // pred_region
          _
        $region20: #{tpu_custom_call.1} parent=11 // pred_fallthru
          _
        // Predicated region
        $region21: #{tpu_custom_call.1} parent=11 // pred_check
          %p251 = pneg %p153
        $region22: #{tpu_custom_call.1} parent=11 // pred_check_branch
          %253 = sbr.rel (%p251) target = $region24
        $region23: #{tpu_custom_call.1} parent=11 // pred_region
          _
        $region24: #{tpu_custom_call.1} parent=11 // pred_fallthru
          _
        // Predicated region
        $region25: #{tpu_custom_call.1} parent=11 // pred_check
          %p254 = pneg %p174
        $region26: #{tpu_custom_call.1} parent=11 // pred_check_branch
          %256 = sbr.rel (%p254) target = $region28
        $region27: #{tpu_custom_call.1} parent=11 // pred_region
          _
        $region28: #{tpu_custom_call.1} parent=11 // pred_fallthru
          _
      $region12: #{tpu_custom_call.1} parent=5 // pred_fallthru
        _
      %p257 = scmp.lt.s32.totalorder %s22, 6
      // Predicated region
      $region29: #{tpu_custom_call.1} parent=5 // pred_check
        %p258 = pneg %p257
      $region30: #{tpu_custom_call.1} parent=5 // pred_check_branch
        %260 = sbr.rel (%p258) target = $region32
      $region31: #{tpu_custom_call.1} parent=5 // pred_region
        // Predicated region
        $region33: #{tpu_custom_call.1} parent=31 // pred_check
          %p261 = pneg %p56
        $region34: #{tpu_custom_call.1} parent=31 // pred_check_branch
          %263 = sbr.rel (%p261) target = $region36
        $region35: #{tpu_custom_call.1} parent=31 // pred_region
          %s264 = smul.u32 8, %s30
          %p265 = scmp.lt.s32.totalorder %s29, 1
          %s266 = scalar_select %p265, %s29, 1
          %p267 = scmp.lt.s32.totalorder %s264, 23
          %s268 = scalar_select %p267, %s264, 23
          %s269 = smul.addr %s266, 24
          %s270 = sadd.s32 %s268, %s269
          %s271 = smul.addr %s270, 4
          %s272 = scalar_lea.vmem %s0, %s271
          %s273 = smul.u32 8, %s30
        $region36: #{tpu_custom_call.1} parent=31 // pred_fallthru
          _
        // Predicated region
        $region37: #{tpu_custom_call.1} parent=31 // pred_check
          %p274 = pneg %p84
        $region38: #{tpu_custom_call.1} parent=31 // pred_check_branch
          %276 = sbr.rel (%p274) target = $region40
        $region39: #{tpu_custom_call.1} parent=31 // pred_region
          %p277 = scmp.lt.s32.totalorder %s29, 1
          %s278 = scalar_select %p277, %s29, 1
          %p279 = scmp.lt.s32.totalorder %s30, 2
          %s280 = scalar_select %p279, %s30, 2
          %s281 = smul.addr %s278, 3
          %s282 = sadd.s32 %s280, %s281
          %s283 = smul.addr %s282, 8
          %s284 = scalar_lea.vmem %s1, %s283
        $region40: #{tpu_custom_call.1} parent=31 // pred_fallthru
          _
      $region32: #{tpu_custom_call.1} parent=5 // pred_fallthru
        _
      %p285 = scmp.le.s32.totalorder 1, %s22
      %p286 = scmp.lt.s32.totalorder %s22, 7
      %p287 = pnand %p285, %p286
      %p288 = pneg %p287
      // Predicated region
      $region41: #{tpu_custom_call.1} parent=5 // pred_check
        _
      $region42: #{tpu_custom_call.1} parent=5 // pred_check_branch
        %290 = sbr.rel (%p287) target = $region44
      $region43: #{tpu_custom_call.1} parent=5 // pred_region
        %s291 = ssub.s32 %s22, 1
        %s292 = smul.u32 8, %s32
        %p293 = scmp.lt.s32.totalorder %s31, 1
        %s294 = scalar_select %p293, %s31, 1
        %p295 = scmp.lt.s32.totalorder %s292, 23
        %s296 = scalar_select %p295, %s292, 23
        %s297 = smul.addr %s294, 24
        %s298 = sadd.s32 %s296, %s297
        %s299 = smul.addr %s298, 4
        %s300 = scalar_lea.vmem %s0, %s299
        %p301 = pneg %p62
        %p302 = pneg %p59
        %p303 = scmp.lt.s32.totalorder %s31, 1
        %s304 = scalar_select %p303, %s31, 1
        %p305 = scmp.lt.s32.totalorder %s32, 2
        %s306 = scalar_select %p305, %s32, 2
        %s307 = smul.addr %s304, 3
        %s308 = sadd.s32 %s306, %s307
        %s309 = smul.addr %s308, 8
        %s310 = scalar_lea.vmem %s1, %s309
        %p311 = pneg %p90
        %p312 = pneg %p87
        %p313 = pneg %p111
        %p314 = pneg %p108
        %p315 = pneg %p132
        %p316 = pneg %p129
        %p317 = pneg %p153
        %p318 = pneg %p150
        %p319 = pneg %p174
        %p320 = pneg %p171
        %p321 = pneg %p202
        %p322 = pneg %p199
        %s323 = sand.u32 %s189, 1
        %s324 = scalar_lea.sflag [#allocation5], %s323
        %s325 = sand.u32 %s189, 1
        %s326 = smul.addr %s325, 8
        %s327 = scalar_lea.vmem [#allocation4], %s326
        %p328 = pneg %p230
        %p329 = pneg %p227
        %s330 = sand.u32 %s217, 1
        %s331 = scalar_lea.sflag [#allocation7], %s330
        %s332 = sand.u32 %s217, 1
        %s333 = scalar_lea.vmem [#allocation6], %s332
        %s334 = smul.u32 8, %s32
        %p335 = scmp.lt.s32.totalorder %s31, 1
        %s336 = scalar_select %p335, %s31, 1
        %p337 = scmp.lt.s32.totalorder %s334, 23
        %s338 = scalar_select %p337, %s334, 23
        %s339 = smul.addr %s336, 24
        %s340 = sadd.s32 %s338, %s339
        %s341 = smul.addr %s340, 4
        %s342 = scalar_lea.vmem %s0, %s341
        %s343 = smul.u32 8, %s32
        %p344 = scmp.lt.s32.totalorder %s31, 1
        %s345 = scalar_select %p344, %s31, 1
        %p346 = scmp.lt.s32.totalorder %s32, 2
        %s347 = scalar_select %p346, %s32, 2
        %s348 = smul.addr %s345, 3
        %s349 = sadd.s32 %s347, %s348
        %s350 = smul.addr %s349, 8
        %s351 = scalar_lea.vmem %s1, %s350
        %v352 = vld [vmem:[%s2] sm:$0xff]
        %v353 = vld [vmem:[%s2 + $0x8] sm:$0xff]
        %v354 = vld [vmem:[%s2 + $0x10] sm:$0xff]
        %v355 = vld [vmem:[%s2 + $0x18] sm:$0xff]
        %v356 = vld [vmem:[%s3] sm:$0xff]
        %v357 = vld [vmem:[%s3 + $0x8] sm:$0xff]
        %v358 = vld [vmem:[%s3 + $0x10] sm:$0xff]
        %v359 = vld [vmem:[%s3 + $0x18] sm:$0xff]
        %361 = vset.pattern.permute.xlu0 0
        %362 = vperm.xlu0 %361, %v356
        %v363 = vpop.permute.xlu0 %362
        %366 = vset.pattern.permute.xlu0 0
        %367 = vperm.xlu0 %366, %v357
        %v368 = vpop.permute.xlu0 %367
        %371 = vset.pattern.permute.xlu0 0
        %372 = vperm.xlu0 %371, %v358
        %v373 = vpop.permute.xlu0 %372
        %376 = vset.pattern.permute.xlu0 0
        %377 = vperm.xlu0 %376, %v359
        %v378 = vpop.permute.xlu0 %377
        %v380 = vld [vmem:[%s4] sm:$0xff]
        %v381 = vld [vmem:[%s4 + $0x8] sm:$0xff]
        %v382 = vld [vmem:[%s4 + $0x10] sm:$0xff]
        %v383 = vld [vmem:[%s4 + $0x18] sm:$0xff]
        %385 = vset.pattern.permute.xlu0 0
        %386 = vperm.xlu0 %385, %v380
        %v387 = vpop.permute.xlu0 %386
        %390 = vset.pattern.permute.xlu0 0
        %391 = vperm.xlu0 %390, %v381
        %v392 = vpop.permute.xlu0 %391
        %395 = vset.pattern.permute.xlu0 0
        %396 = vperm.xlu0 %395, %v382
        %v397 = vpop.permute.xlu0 %396
        %400 = vset.pattern.permute.xlu0 0
        %401 = vperm.xlu0 %400, %v383
        %v402 = vpop.permute.xlu0 %401
        %v404 = vld [vmem:[#allocation3] sm:$0x1]
        %406 = vset.pattern.permute.xlu0 0
        %407 = vperm.xlu0 %406, %v404
        %v408 = vpop.permute.xlu0 %407
        %v410 = vperm.slane %v408, 0
        %v411 = vld [vmem:[%s342] sm:$0x7]
        %vm412 = vcmask 23552
        %v414 = vsel %vm412, %v352, 0
        %v417 = vsel %vm412, %v353, 0
        %v420 = vsel %vm412, %v354, 0
        %v423 = vsel %vm412, %v355, 0
        %vm425 = vcmask 1042432
        %v427 = vsel %vm425, %v411, 0
        %429 = vmatpush.msra.mxu0 0.0
        %430 = vmatpush.msra.mxu0 0.0
        %431 = vmatpush.msra.mxu0 0.0
        %432 = vmatpush.msra.mxu0 0.0
        %433 = vmatpush.msra.mxu0 0.0
        %434 = vmatpush.msra.mxu0 0.0
        %435 = vmatpush.msra.mxu0 0.0
        %436 = vmatpush.msra.mxu0 0.0
        %437 = vmatpush.msra.mxu0 0.0
        %438 = vmatpush.msra.mxu0 0.0
        %439 = vmatpush.msra.mxu0 0.0
        %440 = vmatpush.msra.mxu0 0.0
        %441 = vmatpush.msra.mxu0 0.0
        %442 = vmatpush.msra.mxu0 0.0
        %443 = vmatpush.msra.mxu0 0.0
        %444 = vmatpush.msra.mxu0 %v427
        %445 = vmatmul.f32.gmra.mxu0 %v414
        %v446 = vpop.f32.mrf.mxu0
        %v447 = vadd.f32 %v363, %v446
        %448 = vmatmul.f32.gmra.mxu0 %v417
        %v449 = vpop.f32.mrf.mxu0
        %v450 = vadd.f32 %v368, %v449
        %451 = vmatmul.f32.gmra.mxu0 %v420
        %v452 = vpop.f32.mrf.mxu0
        %v453 = vadd.f32 %v373, %v452
        %454 = vmatmul.f32.gmra.mxu0 %v423
        %v455 = vpop.f32.mrf.mxu0
        %v456 = vadd.f32 %v378, %v455
        %457 = vdwg.mxu0
        %v458 = vmax.f32 %v447, 0.0
        %v459 = vmax.f32 %v450, 0.0
        %v460 = vmax.f32 %v453, 0.0
        %v461 = vmax.f32 %v456, 0.0
        %v462 = vmul.f32 %v458, %v387
        %v463 = vmul.f32 %v459, %v392
        %v464 = vmul.f32 %v460, %v397
        %v465 = vmul.f32 %v461, %v402
        %v466 = vadd.f32 %v462, %v463
        %v467 = vadd.f32 %v466, %v464
        %v468 = vadd.f32 %v467, %v465
        %v469 = vrot.slane %v468, 4
        %v470 = vadd.f32 %v468, %v469
        %v471 = vrot.slane %v470, 2
        %v472 = vadd.f32 %v470, %v471
        %v473 = vrot.slane %v472, 1
        %v474 = vadd.f32 %v472, %v473
        %v475 = vadd.f32 %v474, %v410
        %476 = vst [vmem:[#allocation2] sm:$0x1] %v475
        %v477 = vld [vmem:[%s342 + $0x4] sm:$0x7]
        %v479 = vsel %vm425, %v477, 0
        %481 = vmatpush.msra.mxu0 0.0
        %482 = vmatpush.msra.mxu0 0.0
        %483 = vmatpush.msra.mxu0 0.0
        %484 = vmatpush.msra.mxu0 0.0
        %485 = vmatpush.msra.mxu0 0.0
        %486 = vmatpush.msra.mxu0 0.0
        %487 = vmatpush.msra.mxu0 0.0
        %488 = vmatpush.msra.mxu0 0.0
        %489 = vmatpush.msra.mxu0 0.0
        %490 = vmatpush.msra.mxu0 0.0
        %491 = vmatpush.msra.mxu0 0.0
        %492 = vmatpush.msra.mxu0 0.0
        %493 = vmatpush.msra.mxu0 0.0
        %494 = vmatpush.msra.mxu0 0.0
        %495 = vmatpush.msra.mxu0 0.0
        %496 = vmatpush.msra.mxu0 %v479
        %497 = vmatmul.f32.gmra.mxu0 %v414
        %v498 = vpop.f32.mrf.mxu0
        %v499 = vadd.f32 %v363, %v498
        %500 = vmatmul.f32.gmra.mxu0 %v417
        %v501 = vpop.f32.mrf.mxu0
        %v502 = vadd.f32 %v368, %v501
        %503 = vmatmul.f32.gmra.mxu0 %v420
        %v504 = vpop.f32.mrf.mxu0
        %v505 = vadd.f32 %v373, %v504
        %506 = vmatmul.f32.gmra.mxu0 %v423
        %v507 = vpop.f32.mrf.mxu0
        %v508 = vadd.f32 %v378, %v507
        %509 = vdwg.mxu0
        %v510 = vmax.f32 %v499, 0.0
        %v511 = vmax.f32 %v502, 0.0
        %v512 = vmax.f32 %v505, 0.0
        %v513 = vmax.f32 %v508, 0.0
        %v514 = vmul.f32 %v510, %v387
        %v515 = vmul.f32 %v511, %v392
        %v516 = vmul.f32 %v512, %v397
        %v517 = vmul.f32 %v513, %v402
        %v518 = vadd.f32 %v514, %v515
        %v519 = vadd.f32 %v518, %v516
        %v520 = vadd.f32 %v519, %v517
        %v521 = vrot.slane %v520, 4
        %v522 = vadd.f32 %v520, %v521
        %v523 = vrot.slane %v522, 2
        %v524 = vadd.f32 %v522, %v523
        %v525 = vrot.slane %v524, 1
        %v526 = vadd.f32 %v524, %v525
        %v527 = vadd.f32 %v526, %v410
        %528 = vst [vmem:[#allocation2 + $0x1] sm:$0x1] %v527
        %v529 = vld [vmem:[%s342 + $0x8] sm:$0x7]
        %v531 = vsel %vm425, %v529, 0
        %533 = vmatpush.msra.mxu0 0.0
        %534 = vmatpush.msra.mxu0 0.0
        %535 = vmatpush.msra.mxu0 0.0
        %536 = vmatpush.msra.mxu0 0.0
        %537 = vmatpush.msra.mxu0 0.0
        %538 = vmatpush.msra.mxu0 0.0
        %539 = vmatpush.msra.mxu0 0.0
        %540 = vmatpush.msra.mxu0 0.0
        %541 = vmatpush.msra.mxu0 0.0
        %542 = vmatpush.msra.mxu0 0.0
        %543 = vmatpush.msra.mxu0 0.0
        %544 = vmatpush.msra.mxu0 0.0
        %545 = vmatpush.msra.mxu0 0.0
        %546 = vmatpush.msra.mxu0 0.0
        %547 = vmatpush.msra.mxu0 0.0
        %548 = vmatpush.msra.mxu0 %v531
        %549 = vmatmul.f32.gmra.mxu0 %v414
        %v550 = vpop.f32.mrf.mxu0
        %v551 = vadd.f32 %v363, %v550
        %552 = vmatmul.f32.gmra.mxu0 %v417
        %v553 = vpop.f32.mrf.mxu0
        %v554 = vadd.f32 %v368, %v553
        %555 = vmatmul.f32.gmra.mxu0 %v420
        %v556 = vpop.f32.mrf.mxu0
        %v557 = vadd.f32 %v373, %v556
        %558 = vmatmul.f32.gmra.mxu0 %v423
        %v559 = vpop.f32.mrf.mxu0
        %v560 = vadd.f32 %v378, %v559
        %561 = vdwg.mxu0
        %v562 = vmax.f32 %v551, 0.0
        %v563 = vmax.f32 %v554, 0.0
        %v564 = vmax.f32 %v557, 0.0
        %v565 = vmax.f32 %v560, 0.0
        %v566 = vmul.f32 %v562, %v387
        %v567 = vmul.f32 %v563, %v392
        %v568 = vmul.f32 %v564, %v397
        %v569 = vmul.f32 %v565, %v402
        %v570 = vadd.f32 %v566, %v567
        %v571 = vadd.f32 %v570, %v568
        %v572 = vadd.f32 %v571, %v569
        %v573 = vrot.slane %v572, 4
        %v574 = vadd.f32 %v572, %v573
        %v575 = vrot.slane %v574, 2
        %v576 = vadd.f32 %v574, %v575
        %v577 = vrot.slane %v576, 1
        %v578 = vadd.f32 %v576, %v577
        %v579 = vadd.f32 %v578, %v410
        %580 = vst [vmem:[#allocation2 + $0x2] sm:$0x1] %v579
        %v581 = vld [vmem:[%s342 + $0xc] sm:$0x7]
        %v583 = vsel %vm425, %v581, 0
        %585 = vmatpush.msra.mxu0 0.0
        %586 = vmatpush.msra.mxu0 0.0
        %587 = vmatpush.msra.mxu0 0.0
        %588 = vmatpush.msra.mxu0 0.0
        %589 = vmatpush.msra.mxu0 0.0
        %590 = vmatpush.msra.mxu0 0.0
        %591 = vmatpush.msra.mxu0 0.0
        %592 = vmatpush.msra.mxu0 0.0
        %593 = vmatpush.msra.mxu0 0.0
        %594 = vmatpush.msra.mxu0 0.0
        %595 = vmatpush.msra.mxu0 0.0
        %596 = vmatpush.msra.mxu0 0.0
        %597 = vmatpush.msra.mxu0 0.0
        %598 = vmatpush.msra.mxu0 0.0
        %599 = vmatpush.msra.mxu0 0.0
        %600 = vmatpush.msra.mxu0 %v583
        %601 = vmatmul.f32.gmra.mxu0 %v414
        %v602 = vpop.f32.mrf.mxu0
        %v603 = vadd.f32 %v363, %v602
        %604 = vmatmul.f32.gmra.mxu0 %v417
        %v605 = vpop.f32.mrf.mxu0
        %v606 = vadd.f32 %v368, %v605
        %607 = vmatmul.f32.gmra.mxu0 %v420
        %v608 = vpop.f32.mrf.mxu0
        %v609 = vadd.f32 %v373, %v608
        %610 = vmatmul.f32.gmra.mxu0 %v423
        %v611 = vpop.f32.mrf.mxu0
        %v612 = vadd.f32 %v378, %v611
        %613 = vdwg.mxu0
        %v614 = vmax.f32 %v603, 0.0
        %v615 = vmax.f32 %v606, 0.0
        %v616 = vmax.f32 %v609, 0.0
        %v617 = vmax.f32 %v612, 0.0
        %v618 = vmul.f32 %v614, %v387
        %v619 = vmul.f32 %v615, %v392
        %v620 = vmul.f32 %v616, %v397
        %v621 = vmul.f32 %v617, %v402
        %v622 = vadd.f32 %v618, %v619
        %v623 = vadd.f32 %v622, %v620
        %v624 = vadd.f32 %v623, %v621
        %v625 = vrot.slane %v624, 4
        %v626 = vadd.f32 %v624, %v625
        %v627 = vrot.slane %v626, 2
        %v628 = vadd.f32 %v626, %v627
        %v629 = vrot.slane %v628, 1
        %v630 = vadd.f32 %v628, %v629
        %v631 = vadd.f32 %v630, %v410
        %632 = vst [vmem:[#allocation2 + $0x3] sm:$0x1] %v631
        %v633 = vld [vmem:[%s342 + $0x10] sm:$0x7]
        %v635 = vsel %vm425, %v633, 0
        %637 = vmatpush.msra.mxu0 0.0
        %638 = vmatpush.msra.mxu0 0.0
        %639 = vmatpush.msra.mxu0 0.0
        %640 = vmatpush.msra.mxu0 0.0
        %641 = vmatpush.msra.mxu0 0.0
        %642 = vmatpush.msra.mxu0 0.0
        %643 = vmatpush.msra.mxu0 0.0
        %644 = vmatpush.msra.mxu0 0.0
        %645 = vmatpush.msra.mxu0 0.0
        %646 = vmatpush.msra.mxu0 0.0
        %647 = vmatpush.msra.mxu0 0.0
        %648 = vmatpush.msra.mxu0 0.0
        %649 = vmatpush.msra.mxu0 0.0
        %650 = vmatpush.msra.mxu0 0.0
        %651 = vmatpush.msra.mxu0 0.0
        %652 = vmatpush.msra.mxu0 %v635
        %653 = vmatmul.f32.gmra.mxu0 %v414
        %v654 = vpop.f32.mrf.mxu0
        %v655 = vadd.f32 %v363, %v654
        %656 = vmatmul.f32.gmra.mxu0 %v417
        %v657 = vpop.f32.mrf.mxu0
        %v658 = vadd.f32 %v368, %v657
        %659 = vmatmul.f32.gmra.mxu0 %v420
        %v660 = vpop.f32.mrf.mxu0
        %v661 = vadd.f32 %v373, %v660
        %662 = vmatmul.f32.gmra.mxu0 %v423
        %v663 = vpop.f32.mrf.mxu0
        %v664 = vadd.f32 %v378, %v663
        %665 = vdwg.mxu0
        %v666 = vmax.f32 %v655, 0.0
        %v667 = vmax.f32 %v658, 0.0
        %v668 = vmax.f32 %v661, 0.0
        %v669 = vmax.f32 %v664, 0.0
        %v670 = vmul.f32 %v666, %v387
        %v671 = vmul.f32 %v667, %v392
        %v672 = vmul.f32 %v668, %v397
        %v673 = vmul.f32 %v669, %v402
        %v674 = vadd.f32 %v670, %v671
        %v675 = vadd.f32 %v674, %v672
        %v676 = vadd.f32 %v675, %v673
        %v677 = vrot.slane %v676, 4
        %v678 = vadd.f32 %v676, %v677
        %v679 = vrot.slane %v678, 2
        %v680 = vadd.f32 %v678, %v679
        %v681 = vrot.slane %v680, 1
        %v682 = vadd.f32 %v680, %v681
        %v683 = vadd.f32 %v682, %v410
        %684 = vst [vmem:[#allocation2 + $0x4] sm:$0x1] %v683
        %v685 = vld [vmem:[%s342 + $0x14] sm:$0x7]
        %v687 = vsel %vm425, %v685, 0
        %689 = vmatpush.msra.mxu0 0.0
        %690 = vmatpush.msra.mxu0 0.0
        %691 = vmatpush.msra.mxu0 0.0
        %692 = vmatpush.msra.mxu0 0.0
        %693 = vmatpush.msra.mxu0 0.0
        %694 = vmatpush.msra.mxu0 0.0
        %695 = vmatpush.msra.mxu0 0.0
        %696 = vmatpush.msra.mxu0 0.0
        %697 = vmatpush.msra.mxu0 0.0
        %698 = vmatpush.msra.mxu0 0.0
        %699 = vmatpush.msra.mxu0 0.0
        %700 = vmatpush.msra.mxu0 0.0
        %701 = vmatpush.msra.mxu0 0.0
        %702 = vmatpush.msra.mxu0 0.0
        %703 = vmatpush.msra.mxu0 0.0
        %704 = vmatpush.msra.mxu0 %v687
        %705 = vmatmul.f32.gmra.mxu0 %v414
        %v706 = vpop.f32.mrf.mxu0
        %v707 = vadd.f32 %v363, %v706
        %708 = vmatmul.f32.gmra.mxu0 %v417
        %v709 = vpop.f32.mrf.mxu0
        %v710 = vadd.f32 %v368, %v709
        %711 = vmatmul.f32.gmra.mxu0 %v420
        %v712 = vpop.f32.mrf.mxu0
        %v713 = vadd.f32 %v373, %v712
        %714 = vmatmul.f32.gmra.mxu0 %v423
        %v715 = vpop.f32.mrf.mxu0
        %v716 = vadd.f32 %v378, %v715
        %717 = vdwg.mxu0
        %v718 = vmax.f32 %v707, 0.0
        %v719 = vmax.f32 %v710, 0.0
        %v720 = vmax.f32 %v713, 0.0
        %v721 = vmax.f32 %v716, 0.0
        %v722 = vmul.f32 %v718, %v387
        %v723 = vmul.f32 %v719, %v392
        %v724 = vmul.f32 %v720, %v397
        %v725 = vmul.f32 %v721, %v402
        %v726 = vadd.f32 %v722, %v723
        %v727 = vadd.f32 %v726, %v724
        %v728 = vadd.f32 %v727, %v725
        %v729 = vrot.slane %v728, 4
        %v730 = vadd.f32 %v728, %v729
        %v731 = vrot.slane %v730, 2
        %v732 = vadd.f32 %v730, %v731
        %v733 = vrot.slane %v732, 1
        %v734 = vadd.f32 %v732, %v733
        %v735 = vadd.f32 %v734, %v410
        %736 = vst [vmem:[#allocation2 + $0x5] sm:$0x1] %v735
        %v737 = vld [vmem:[%s342 + $0x18] sm:$0x7]
        %v739 = vsel %vm425, %v737, 0
        %741 = vmatpush.msra.mxu0 0.0
        %742 = vmatpush.msra.mxu0 0.0
        %743 = vmatpush.msra.mxu0 0.0
        %744 = vmatpush.msra.mxu0 0.0
        %745 = vmatpush.msra.mxu0 0.0
        %746 = vmatpush.msra.mxu0 0.0
        %747 = vmatpush.msra.mxu0 0.0
        %748 = vmatpush.msra.mxu0 0.0
        %749 = vmatpush.msra.mxu0 0.0
        %750 = vmatpush.msra.mxu0 0.0
        %751 = vmatpush.msra.mxu0 0.0
        %752 = vmatpush.msra.mxu0 0.0
        %753 = vmatpush.msra.mxu0 0.0
        %754 = vmatpush.msra.mxu0 0.0
        %755 = vmatpush.msra.mxu0 0.0
        %756 = vmatpush.msra.mxu0 %v739
        %757 = vmatmul.f32.gmra.mxu0 %v414
        %v758 = vpop.f32.mrf.mxu0
        %v759 = vadd.f32 %v363, %v758
        %760 = vmatmul.f32.gmra.mxu0 %v417
        %v761 = vpop.f32.mrf.mxu0
        %v762 = vadd.f32 %v368, %v761
        %763 = vmatmul.f32.gmra.mxu0 %v420
        %v764 = vpop.f32.mrf.mxu0
        %v765 = vadd.f32 %v373, %v764
        %766 = vmatmul.f32.gmra.mxu0 %v423
        %v767 = vpop.f32.mrf.mxu0
        %v768 = vadd.f32 %v378, %v767
        %769 = vdwg.mxu0
        %v770 = vmax.f32 %v759, 0.0
        %v771 = vmax.f32 %v762, 0.0
        %v772 = vmax.f32 %v765, 0.0
        %v773 = vmax.f32 %v768, 0.0
        %v774 = vmul.f32 %v770, %v387
        %v775 = vmul.f32 %v771, %v392
        %v776 = vmul.f32 %v772, %v397
        %v777 = vmul.f32 %v773, %v402
        %v778 = vadd.f32 %v774, %v775
        %v779 = vadd.f32 %v778, %v776
        %v780 = vadd.f32 %v779, %v777
        %v781 = vrot.slane %v780, 4
        %v782 = vadd.f32 %v780, %v781
        %v783 = vrot.slane %v782, 2
        %v784 = vadd.f32 %v782, %v783
        %v785 = vrot.slane %v784, 1
        %v786 = vadd.f32 %v784, %v785
        %v787 = vadd.f32 %v786, %v410
        %788 = vst [vmem:[#allocation2 + $0x6] sm:$0x1] %v787
        %v789 = vld [vmem:[%s342 + $0x1c] sm:$0x7]
        %v791 = vsel %vm425, %v789, 0
        %793 = vmatpush.msra.mxu0 0.0
        %794 = vmatpush.msra.mxu0 0.0
        %795 = vmatpush.msra.mxu0 0.0
        %796 = vmatpush.msra.mxu0 0.0
        %797 = vmatpush.msra.mxu0 0.0
        %798 = vmatpush.msra.mxu0 0.0
        %799 = vmatpush.msra.mxu0 0.0
        %800 = vmatpush.msra.mxu0 0.0
        %801 = vmatpush.msra.mxu0 0.0
        %802 = vmatpush.msra.mxu0 0.0
        %803 = vmatpush.msra.mxu0 0.0
        %804 = vmatpush.msra.mxu0 0.0
        %805 = vmatpush.msra.mxu0 0.0
        %806 = vmatpush.msra.mxu0 0.0
        %807 = vmatpush.msra.mxu0 0.0
        %808 = vmatpush.msra.mxu0 %v791
        %809 = vmatmul.f32.gmra.mxu0 %v414
        %v810 = vpop.f32.mrf.mxu0
        %v811 = vadd.f32 %v363, %v810
        %812 = vmatmul.f32.gmra.mxu0 %v417
        %v813 = vpop.f32.mrf.mxu0
        %v814 = vadd.f32 %v368, %v813
        %815 = vmatmul.f32.gmra.mxu0 %v420
        %v816 = vpop.f32.mrf.mxu0
        %v817 = vadd.f32 %v373, %v816
        %818 = vmatmul.f32.gmra.mxu0 %v423
        %v819 = vpop.f32.mrf.mxu0
        %v820 = vadd.f32 %v378, %v819
        %821 = vdwg.mxu0
        %v822 = vmax.f32 %v811, 0.0
        %v823 = vmax.f32 %v814, 0.0
        %v824 = vmax.f32 %v817, 0.0
        %v825 = vmax.f32 %v820, 0.0
        %v826 = vmul.f32 %v822, %v387
        %v827 = vmul.f32 %v823, %v392
        %v828 = vmul.f32 %v824, %v397
        %v829 = vmul.f32 %v825, %v402
        %v830 = vadd.f32 %v826, %v827
        %v831 = vadd.f32 %v830, %v828
        %v832 = vadd.f32 %v831, %v829
        %v833 = vrot.slane %v832, 4
        %v834 = vadd.f32 %v832, %v833
        %v835 = vrot.slane %v834, 2
        %v836 = vadd.f32 %v834, %v835
        %v837 = vrot.slane %v836, 1
        %v838 = vadd.f32 %v836, %v837
        %v839 = vadd.f32 %v838, %v410
        %840 = vst [vmem:[#allocation2 + $0x7] sm:$0x1] %v839
        %v841 = vld [vmem:[#allocation2] sm:$0xff]
        %v842 = vld [vmem:[%s351] sm:$0xff]
        %v843 = vxor.u32 %v841, 2147483648
        %v844 = vmul.f32 %v843, 1.442695
        %v845 = vpow.pop %v844
        %v846 = vadd.f32 %v845, 1.0
        %v847 = vrcp.pop %v846
        %v848 = vmul.f32 %v846, %v847
        %v849 = vsub.f32 1.0, %v848
        %v850 = vmul.f32 %v847, %v849
        %v851 = vadd.f32 %v847, %v850
        %vm852 = vweird.f32 %v846
        %vm853 = vweird.f32 %v847
        %vm854 = vmor %vm852, %vm853
        %v855 = vsel %vm854, %v847, %v851
        %v856 = vand.u32 2147483647, %v846
        %vm857 = vcmp.eq.f32.partialorder %v856, 8.507059e+37
        %v858 = vand.u32 %v846, 2147483648
        %v859 = vor.u32 1.1754944e-38, %v858
        %v860 = vsel %vm857, %v859, %v855
        %v861 = vmul.f32 1.0, %v860
        %v862 = vmul.f32 %v861, 9.999
        %v863 = vadd.f32 %v862, 0.001
        %864 = vst [vmem:[%s327] sm:$0xff] %v863
        %vm865 = vcmp.gt.f32.partialorder %v842, 0.001
        %vm866 = vcmp.lt.f32.partialorder %v842, 10.0
        %vm867 = vmand %vm865, %vm866
        %v868 = vlog2.pop %v863
        %v869 = vmul.f32 %v868, 0.6931472
        %v870 = vmax.f32 %v842, 1e-08
        %v871 = vlog2.pop %v870
        %v872 = vmul.f32 %v871, 0.6931472
        %v873 = vsub.f32 %v869, %v872
        %v874 = vsel %vm867, %v873, 0.0
        %875 = vadd.xlane.f32.xlu0 %v874
        %v876 = vpop.xlane.xlu0 %875
        %v877 = vrot.slane %v876, 4
        %v878 = vadd.f32 %v876, %v877
        %v879 = vrot.slane %v878, 2
        %v880 = vadd.f32 %v878, %v879
        %v881 = vrot.slane %v880, 1
        %v882 = vadd.f32 %v880, %v881
        %s883 = vtos %v882
        %v884 = vmul.f32 %v874, %v874
        %885 = vadd.xlane.f32.xlu0 %v884
        %v886 = vpop.xlane.xlu0 %885
        %v887 = vrot.slane %v886, 4
        %v888 = vadd.f32 %v886, %v887
        %v889 = vrot.slane %v888, 2
        %v890 = vadd.f32 %v888, %v889
        %v891 = vrot.slane %v890, 1
        %v892 = vadd.f32 %v890, %v891
        %s893 = vtos %v892
        %v894 = vsel %vm867, 1, 0
        %v895 = vcvt.s32.f32 %v894
        %896 = vadd.xlane.f32.xlu0 %v895
        %v897 = vpop.xlane.xlu0 %896
        %v898 = vrot.slane %v897, 4
        %v899 = vadd.f32 %v897, %v898
        %v900 = vrot.slane %v899, 2
        %v901 = vadd.f32 %v899, %v900
        %v902 = vrot.slane %v901, 1
        %v903 = vadd.f32 %v901, %v902
        %s904 = vtos %v903
        %v905 = vlaneseq
        %v906 = vand.u32 %v905, 127
        %vm907 = vcmp.eq.s32.totalorder %v906, 0
        %vm908 = vcmp.eq.s32.totalorder %v906, 1
        %vm909 = vcmp.eq.s32.totalorder %v906, 2
        %v910 = vstv %s904
        %v911 = vsel %vm909, %v910, 0.0
        %v912 = vstv %s893
        %v913 = vsel %vm908, %v912, %v911
        %v914 = vstv %s883
        %v915 = vsel %vm907, %v914, %v913
        %916 = vst [vmem:[%s333] sm:$0x1] %v915
        %s917 = sand.u32 %s189, 1
        %s918 = scalar_lea.sflag [#allocation5], %s917
        %s919 = sand.u32 %s189, 1
        %s920 = smul.addr %s919, 8
        %s921 = scalar_lea.vmem [#allocation4], %s920
        %s922 = sand.u32 %s217, 1
        %s923 = scalar_lea.sflag [#allocation7], %s922
        %s924 = sand.u32 %s217, 1
        %s925 = scalar_lea.vmem [#allocation6], %s924
        // Predicated region
        $region45: #{tpu_custom_call.1} parent=43 // pred_check
          %p926 = pneg %p199
        $region46: #{tpu_custom_call.1} parent=43 // pred_check_branch
          %928 = sbr.rel (%p926) target = $region48
        $region47: #{tpu_custom_call.1} parent=43 // pred_region
          %930 = vsyncadd %s918, 0
          %s931 = smul.addr %s31, 3
          %s932 = sadd.s32 %s32, %s931
          %s933 = smul.addr %s932, 8
          %s934 = scalar_lea.hbm %s6, %s933
          %s936 = sshll.u32 %s921, 4
          %s937 = int_to_ptr.vmem [resolvable:$true] %s936
          %s938 = sshll.u32 %s934, 4
          %s939 = int_to_ptr.hbm [resolvable:$true] %s938
          %941 = dma.vmem_to_hbm [thread:$0]  %s937, 128, %s939, %s918
        $region48: #{tpu_custom_call.1} parent=43 // pred_fallthru
          _
        // Predicated region
        $region49: #{tpu_custom_call.1} parent=43 // pred_check
          %p942 = pneg %p227
        $region50: #{tpu_custom_call.1} parent=43 // pred_check_branch
          %944 = sbr.rel (%p942) target = $region52
        $region51: #{tpu_custom_call.1} parent=43 // pred_region
          %946 = vsyncadd %s923, 0
          %s947 = smul.addr %s31, 3
          %s948 = sadd.s32 %s32, %s947
          %s949 = scalar_lea.hbm %s7, %s948
          %s951 = sshll.u32 %s925, 4
          %s952 = int_to_ptr.vmem [resolvable:$true] %s951
          %s953 = sshll.u32 %s949, 4
          %s954 = int_to_ptr.hbm [resolvable:$true] %s953
          %956 = dma.vmem_to_hbm [thread:$0]  %s952, 16, %s954, %s923
        $region52: #{tpu_custom_call.1} parent=43 // pred_fallthru
          _
      $region44: #{tpu_custom_call.1} parent=5 // pred_fallthru
        _
      %p957 = scmp.le.s32.totalorder 2, %s22
      // Predicated region
      $region53: #{tpu_custom_call.1} parent=5 // pred_check
        %p958 = pneg %p957
      $region54: #{tpu_custom_call.1} parent=5 // pred_check_branch
        %960 = sbr.rel (%p958) target = $region56
      $region55: #{tpu_custom_call.1} parent=5 // pred_region
        %s961 = ssub.s32 %s22, 2
        // Predicated region
        $region57: #{tpu_custom_call.1} parent=55 // pred_check
          %p962 = pneg %p205
        $region58: #{tpu_custom_call.1} parent=55 // pred_check_branch
          %964 = sbr.rel (%p962) target = $region60
        $region59: #{tpu_custom_call.1} parent=55 // pred_region
          %s965 = sand.u32 %s190, 1
          %s966 = scalar_lea.sflag [#allocation5], %s965
          %s967 = sand.u32 %s190, 1
          %s968 = smul.addr %s967, 8
          %s969 = scalar_lea.vmem [#allocation4], %s968
          %971 = dma.done %s966, 128
        $region60: #{tpu_custom_call.1} parent=55 // pred_fallthru
          _
        // Predicated region
        $region61: #{tpu_custom_call.1} parent=55 // pred_check
          %p972 = pneg %p233
        $region62: #{tpu_custom_call.1} parent=55 // pred_check_branch
          %974 = sbr.rel (%p972) target = $region64
        $region63: #{tpu_custom_call.1} parent=55 // pred_region
          %s975 = sand.u32 %s218, 1
          %s976 = scalar_lea.sflag [#allocation7], %s975
          %s977 = sand.u32 %s218, 1
          %s978 = scalar_lea.vmem [#allocation6], %s977
          %980 = dma.done %s976, 16
        $region64: #{tpu_custom_call.1} parent=55 // pred_fallthru
          _
      $region56: #{tpu_custom_call.1} parent=5 // pred_fallthru
        _
    $region6: #{tpu_custom_call.1} parent=1 // loop_footer
      %s26 = sadd.s32 1, %s22
    $region7: #{tpu_custom_call.1} parent=1 // loop_footer_branch
      %21 = sbr.rel target = $region3
    $region8: #{tpu_custom_call.1} parent=1 // loop_exit
      _
    %981 = vsyncpa [#allocation5], 1
    %s982 = scalar_lea.sflag [#allocation5], 1
    %983 = vsyncpa %s982, 1
    %984 = vsyncpa [#allocation7], 1
    %s985 = scalar_lea.sflag [#allocation7], 1
    %986 = vsyncpa %s985, 1

</llo_original>
